<compile_context>
chip_gen: v7x
topology: tpu7x:2x2x1
jax: 0.10.0
libtpu: 0.0.40
codegen_flags: <defaults>
</compile_context>

<pallas_src>
import math

import jax
import jax.numpy as jnp
from jax.experimental import pallas as pl
from jax.experimental.pallas import tpu as pltpu


def _round_up(x, m):
    return ((x + m - 1) // m) * m


def _criterion_kernel(yhat_ref, y_ref, mask_ref, scale_ref, shift_ref, out_ref):
    """One (TB, L) batch tile: masked squared error, row-summed into the
    resident (1, L) accumulator. 1/(weighting*B) is applied in the wrapper."""
    t = pl.program_id(0)

    @pl.when(t == 0)
    def _():
        out_ref[...] = jnp.zeros_like(out_ref)

    y_hat = yhat_ref[...].astype(jnp.float32)
    y = y_ref[...].astype(jnp.float32)
    m = mask_ref[...].astype(jnp.float32)

    # adjust(y) = ((2y - 1)(1 - alpha) + 1) / 2  ==  y*(1 - alpha) + alpha/2
    y_adj = y * scale_ref[...] + shift_ref[...]
    diff = y_hat - y_adj
    out_ref[...] += jnp.sum(diff * diff * m, axis=0, keepdims=True)


def criterion_pallas(y_hat, y, nan_mask, alpha, weighting, *,
                     batch_tile=None, binary_mask=True):
    """Matches Criterion.forward:
        mean_over_batch( nan_mask * (y_hat - adjust(y))**2 / weighting )
    `binary_mask=True` assumes a 0/1 mask (as in the module) and ships it as
    int8; pass False to stream a general (non-binary) float mask unchanged."""
    B, F = y_hat.shape
    assert y.shape == (B, F) and nan_mask.shape == (B, F)

    # 0/1 mask at 1 byte/elem, whatever dtype the caller used.
    if binary_mask or nan_mask.dtype == jnp.bool_:
        nan_mask = nan_mask.astype(jnp.int8)

    # Lane packing: k samples per row so the lane axis L = k*F is % 128 == 0.
    k = 128 // math.gcd(F, 128)
    L = k * F

    # Row tiling: target ~512 rows per grid step (~4.5 MiB of f32 bytes at
    # L=1152); TB is 32-aligned so f32 / bf16 / int8 blocks all tile cleanly,
    # and R is padded to a multiple of TB (no ragged last tile).
    R = -(-B // k)
    tb_target = 512 if batch_tile is None else max(1, min(batch_tile, R))
    T = max(1, -(-R // tb_target))
    TB = _round_up(-(-R // T), 32)
    R_pad = T * TB
    B_pad = R_pad * k

    pad = B_pad - B
    if pad:
        # Padded rows carry mask = 0, so they contribute nothing to the sums.
        y_hat = jnp.pad(y_hat, ((0, pad), (0, 0)))
        y = jnp.pad(y, ((0, pad), (0, 0)))
        nan_mask = jnp.pad(nan_mask, ((0, pad), (0, 0)))

    yh2 = y_hat.reshape(R_pad, L)
    y2 = y.reshape(R_pad, L)
    m2 = nan_mask.reshape(R_pad, L)

    alpha32 = alpha.astype(jnp.float32)
    scale = jnp.tile(1.0 - alpha32, k).reshape(1, L)
    shift = jnp.tile(0.5 * alpha32, k).reshape(1, L)

    # Explicit VMEM budget: double-buffered input tiles + small constants,
    # with headroom; clamped to stay inside v7x's 64 MiB-per-core VMEM.
    in_bytes_per_row = sum(jnp.dtype(a.dtype).itemsize for a in (yh2, y2, m2))
    working_set = 2 * TB * L * in_bytes_per_row + 6 * L * 4
    vmem_limit = int(working_set * 1.25) + (2 << 20)
    vmem_limit = min(max(vmem_limit, 16 << 20), 48 << 20)

    row_spec = pl.BlockSpec((TB, L), lambda t: (t, 0))
    vec_spec = pl.BlockSpec((1, L), lambda t: (0, 0))

    out = pl.pallas_call(
        _criterion_kernel,
        out_shape=jax.ShapeDtypeStruct((1, L), jnp.float32),
        grid=(T,),
        in_specs=[row_spec, row_spec, row_spec, vec_spec, vec_spec],
        out_specs=pl.BlockSpec((1, L), lambda t: (0, 0)),
        compiler_params=pltpu.CompilerParams(
            dimension_semantics=("arbitrary",),
            vmem_limit_bytes=vmem_limit),
    )(yh2, y2, m2, scale, shift)

    # (1, k*F) partial sums -> (F,); fold in 1/weighting and the 1/B mean once.
    per_feature = jnp.sum(out.reshape(k, F), axis=0)
    return per_feature / (weighting.astype(jnp.float32) * B)


def criterion_reference(y_hat, y, nan_mask, alpha, weighting):
    """Pure-JAX mirror of the PyTorch forward, for correctness checks."""
    y = y.astype(jnp.float32)
    ones = jnp.ones_like(y)
    ya = y * 2.0 - ones
    ya = ya * (ones - alpha)
    ya = (ya + ones) / 2.0
    loss = (y_hat.astype(jnp.float32) - ya) ** 2 / weighting
    loss = loss * nan_mask.astype(jnp.float32)
    return jnp.mean(loss, axis=0)


if __name__ == "__main__":
    # Deterministic module parameters (from Criterion.__init__)
    var = jnp.array(
        [0.637237519, 0.765471336, 0.869690439, 0.494558767, 0.46360988,
         0.86843845, 0.541910475, 0.863346014, 0.435933443],
        dtype=jnp.float32) ** 2
    non_nan_frac = jnp.array(
        [0.999955096, 0.217191675, 0.229618986, 0.531915849, 0.122942814,
         0.598969443, 0.030518198, 0.059767844, 0.564112351],
        dtype=jnp.float32)
    weighting = var * non_nan_frac
    alpha = jnp.array([0.0, 0.05, 0.05, 0.0, 0.1, 0.0, 0.15, 0.18, 0.0],
                      dtype=jnp.float32)
    F = int(alpha.shape[0])

    key = jax.random.PRNGKey(0)

    def make_inputs(k, B, dtype=jnp.float32):
        k1, k2, k3 = jax.random.split(k, 3)
        y_hat = jax.random.uniform(k1, (B, F), dtype=jnp.float32).astype(dtype)
        y = jax.random.uniform(k2, (B, F), dtype=jnp.float32).astype(dtype)
        nan_mask = jax.random.uniform(k3, (B, F)) > 0.3  # boolean mask
        return y_hat, y, nan_mask

    checks = []

    # A) small batch not a multiple of the 128-sample pack -> exercises the
    #    wrapper-side padding (padded rows masked out) and lane-dense packing.
    yh, yy, mm = make_inputs(jax.random.fold_in(key, 0), 200)
    got = criterion_pallas(yh, yy, mm, alpha, weighting)
    ref = criterion_reference(yh, yy, mm, alpha, weighting)
    checks.append((got, ref, 1e-4, 1e-6))

    # B) float 0/1 mask (cast to int8 in the wrapper).
    yh, yy, mm = make_inputs(jax.random.fold_in(key, 1), 2048)
    got = criterion_pallas(yh, yy, mm.astype(jnp.float32), alpha, weighting)
    ref = criterion_reference(yh, yy, mm, alpha, weighting)
    checks.append((got, ref, 1e-4, 1e-6))

    # C) multi-tile grid (batch_tile override) -> exercises the resident
    #    (1, L) accumulator across several grid steps.
    yh, yy, mm = make_inputs(jax.random.fold_in(key, 2), 12288)
    got = criterion_pallas(yh, yy, mm, alpha, weighting, batch_tile=32)
    ref = criterion_reference(yh, yy, mm, alpha, weighting)
    checks.append((got, ref, 1e-4, 1e-6))

    # D) bf16 targets / predictions (halves the two dominant HBM streams);
    #    upcast to f32 happens in VMEM inside the kernel.
    yh, yy, mm = make_inputs(jax.random.fold_in(key, 3), 4096, dtype=jnp.bfloat16)
    got = criterion_pallas(yh, yy, mm, alpha, weighting)
    ref = criterion_reference(yh, yy, mm, alpha, weighting)
    checks.append((got, ref, 2e-2, 1e-3))

    for got, ref, rtol, atol in checks:
        got = jax.block_until_ready(got)
        assert got.shape == (F,), got.shape
        assert jnp.allclose(got, ref, rtol=rtol, atol=atol), (got, ref)

    print("KERNEL_OK")
</pallas_src>

<mosaic_0001>
module attributes {stable_mosaic.version = 11 : i64} {
  func.func @_criterion_kernel(%arg0: i32, %arg1: memref<32x1152xf32, #tpu.memory_space<vmem>>, %arg2: memref<32x1152xf32, #tpu.memory_space<vmem>>, %arg3: memref<32x1152xi8, #tpu.memory_space<vmem>>, %arg4: memref<1x1152xf32, #tpu.memory_space<vmem>>, %arg5: memref<1x1152xf32, #tpu.memory_space<vmem>>, %arg6: memref<1x1152xf32, #tpu.memory_space<vmem>>) attributes {dimension_semantics = [#tpu.dimension_semantics<arbitrary>], iteration_bounds = array<i64: 1>, scalar_prefetch = 0 : i64, scratch_operands = 0 : i64, tpu.core_type = #tpu.core_type<tc>, window_params = [{transform_indices = @transform_0, window_bounds = array<i64: 32, 1152>}, {transform_indices = @transform_1, window_bounds = array<i64: 32, 1152>}, {transform_indices = @transform_2, window_bounds = array<i64: 32, 1152>}, {pipeline_mode = #tpu.pipeline_mode<synchronous>, transform_indices = @transform_3, window_bounds = array<i64: 1, 1152>}, {pipeline_mode = #tpu.pipeline_mode<synchronous>, transform_indices = @transform_4, window_bounds = array<i64: 1, 1152>}, {pipeline_mode = #tpu.pipeline_mode<synchronous>, transform_indices = @transform_5, window_bounds = array<i64: 1, 1152>}]} {
    %c0_i32 = arith.constant 0 : i32
    %0 = arith.cmpi eq, %arg0, %c0_i32 : i32
    %1 = arith.extui %0 : i1 to i32
    %c0_i32_0 = arith.constant 0 : i32
    %2 = arith.cmpi ne, %1, %c0_i32_0 : i32
    scf.if %2 {
      %cst_14 = arith.constant 0.000000e+00 : f32
      %21 = vector.broadcast %cst_14 : f32 to vector<1x1152xf32>
      %c0_15 = arith.constant 0 : index
      %c0_16 = arith.constant 0 : index
      %22 = vector.load %arg6[%c0_15, %c0_16] : memref<1x1152xf32, #tpu.memory_space<vmem>>, vector<1x1152xf32>
      tpu.vector_store %arg6[%c0_15, %c0_16], %21 {strides = array<i32>} : memref<1x1152xf32, #tpu.memory_space<vmem>>, vector<1x1152xf32>,
    } else {
    }
    %c0 = arith.constant 0 : index
    %c0_1 = arith.constant 0 : index
    %3 = vector.load %arg1[%c0, %c0_1] : memref<32x1152xf32, #tpu.memory_space<vmem>>, vector<32x1152xf32>
    %c0_2 = arith.constant 0 : index
    %c0_3 = arith.constant 0 : index
    %4 = vector.load %arg2[%c0_2, %c0_3] : memref<32x1152xf32, #tpu.memory_space<vmem>>, vector<32x1152xf32>
    %c0_4 = arith.constant 0 : index
    %c0_5 = arith.constant 0 : index
    %5 = vector.load %arg3[%c0_4, %c0_5] : memref<32x1152xi8, #tpu.memory_space<vmem>>, vector<32x1152xi8>
    %6 = arith.sitofp %5 : vector<32x1152xi8> to vector<32x1152xf32>
    %c0_6 = arith.constant 0 : index
    %c0_7 = arith.constant 0 : index
    %7 = vector.load %arg4[%c0_6, %c0_7] : memref<1x1152xf32, #tpu.memory_space<vmem>>, vector<1x1152xf32>
    %8 = vector.broadcast %7 : vector<1x1152xf32> to vector<32x1152xf32>
    %9 = arith.mulf %4, %8 : vector<32x1152xf32>
    %c0_8 = arith.constant 0 : index
    %c0_9 = arith.constant 0 : index
    %10 = vector.load %arg5[%c0_8, %c0_9] : memref<1x1152xf32, #tpu.memory_space<vmem>>, vector<1x1152xf32>
    %11 = vector.broadcast %10 : vector<1x1152xf32> to vector<32x1152xf32>
    %12 = arith.addf %9, %11 : vector<32x1152xf32>
    %13 = arith.subf %3, %12 : vector<32x1152xf32>
    %c0_10 = arith.constant 0 : index
    %c0_11 = arith.constant 0 : index
    %14 = vector.load %arg6[%c0_10, %c0_11] : memref<1x1152xf32, #tpu.memory_space<vmem>>, vector<1x1152xf32>
    %15 = arith.mulf %13, %13 : vector<32x1152xf32>
    %16 = arith.mulf %15, %6 : vector<32x1152xf32>
    %cst = arith.constant dense<0.000000e+00> : vector<1152xf32>
    %17 = vector.multi_reduction <add>, %16, %cst [0] : vector<32x1152xf32> to vector<1152xf32>
    %18 = vector.shape_cast %17 : vector<1152xf32> to vector<1x1152xf32>
    %19 = arith.addf %14, %18 : vector<1x1152xf32>
    %c0_12 = arith.constant 0 : index
    %c0_13 = arith.constant 0 : index
    %20 = vector.load %arg6[%c0_12, %c0_13] : memref<1x1152xf32, #tpu.memory_space<vmem>>, vector<1x1152xf32>
    tpu.vector_store %arg6[%c0_12, %c0_13], %19 {strides = array<i32>} : memref<1x1152xf32, #tpu.memory_space<vmem>>, vector<1x1152xf32>,
    return
  }
  func.func @transform_0(%arg0: i32) -> (i32, i32) {
    %c0_i32 = arith.constant 0 : i32
    %c0_i32_0 = arith.constant 0 : i32
    return %arg0, %c0_i32 : i32, i32
  }
  func.func @transform_1(%arg0: i32) -> (i32, i32) {
    %c0_i32 = arith.constant 0 : i32
    %c0_i32_0 = arith.constant 0 : i32
    return %arg0, %c0_i32 : i32, i32
  }
  func.func @transform_2(%arg0: i32) -> (i32, i32) {
    %c0_i32 = arith.constant 0 : i32
    %c0_i32_0 = arith.constant 0 : i32
    return %arg0, %c0_i32 : i32, i32
  }
  func.func @transform_3(%arg0: i32) -> (i32, i32) {
    %c0_i32 = arith.constant 0 : i32
    %c0_i32_0 = arith.constant 0 : i32
    %c0_i32_1 = arith.constant 0 : i32
    return %c0_i32, %c0_i32_0 : i32, i32
  }
  func.func @transform_4(%arg0: i32) -> (i32, i32) {
    %c0_i32 = arith.constant 0 : i32
    %c0_i32_0 = arith.constant 0 : i32
    %c0_i32_1 = arith.constant 0 : i32
    return %c0_i32, %c0_i32_0 : i32, i32
  }
  func.func @transform_5(%arg0: i32) -> (i32, i32) {
    %c0_i32 = arith.constant 0 : i32
    %c0_i32_0 = arith.constant 0 : i32
    %c0_i32_1 = arith.constant 0 : i32
    return %c0_i32, %c0_i32_0 : i32, i32
  }
}

</mosaic_0001>

<llo_original>
// kernel: tpu_custom_call.1
$region0: #{tpu_custom_call.1}
  #allocation0 [shape = 'u32[]', space=smem, size = 0x4, offset = 0x4, fixed_abs, tag = 'smem constant byte address 0x4 - core index']
  #allocation1 [shape = 'u32[144,128]{1,0:T(1,128)}', space=vmem, size = 0x12000, scoped, tag = 'internal scratch']
  %s0 = inlined_call_operand.hbm [shape: f32[32,1152], index: 0, kind: input, shape index: {}]
  %s1 = inlined_call_operand.hbm [shape: f32[32,1152], index: 1, kind: input, shape index: {}]
  %s2 = inlined_call_operand.hbm [shape: s8[32,1152], index: 2, kind: input, shape index: {}]
  %s3 = inlined_call_operand.vmem [shape: f32[1,1152], index: 3, kind: input, shape index: {}]
  %s4 = inlined_call_operand.hbm [shape: f32[1,1152], index: 4, kind: input, shape index: {}]
  %s5 = inlined_call_operand.hbm [shape: f32[1,1152], index: 5, kind: output, shape index: {}]
  %s6 = sld [smem:[#allocation0]]
  $region50: #{tpu_custom_call.1} parent=0
    _
  %s8 = ssub.s32 1, %s6
  %s9 = scalar_select 0, %s8, %s6
  $region1: #{tpu_custom_call.1} parent=0
    #allocation2 [shape = 'u8[147456]{0}', space=vmem, size = 0x24000, scoped, tag = 'input window, operand 0, single buffered']
    #allocation3 [shape = 's32[1]{0}', space=sflag, size = 0x4, scoped, tag = 'scoped memory for tpu_custom_call.1']
    #allocation4 [shape = 's32[1]{0}', space=sflag, size = 0x4, scoped, tag = 'scoped memory for tpu_custom_call.1']
    #allocation5 [shape = 'u8[147456]{0}', space=vmem, size = 0x24000, scoped, tag = 'input window, operand 1, single buffered']
    #allocation6 [shape = 's32[1]{0}', space=sflag, size = 0x4, scoped, tag = 'scoped memory for tpu_custom_call.1']
    #allocation7 [shape = 'u8[36864]{0}', space=vmem, size = 0x9000, scoped, tag = 'input window, operand 2, single buffered']
    #allocation8 [shape = 'u8[4608]{0}', space=vmem, size = 0x1400, scoped, tag = 'input window, operand 4, single buffered']
    #allocation9 [shape = 's32[1]{0}', space=sflag, size = 0x4, scoped, tag = 'scoped memory for tpu_custom_call.1']
    #allocation10 [shape = 'u8[4608]{0}', space=vmem, size = 0x1400, scoped, tag = 'output window, operand 0, single buffered']
    %10 = vsyncpa [#allocation3], 0
    %11 = vsyncpa [#allocation6], 0
    %12 = vsyncpa [#allocation9], 0
    %13 = vsyncpa [#allocation4], 0
    // Predicated region
    $region2: #{tpu_custom_call.1} parent=1 // pred_check
      _
    $region3: #{tpu_custom_call.1} parent=1 // pred_check_branch
      %15 = sbr.rel (0) target = $region5
    $region4: #{tpu_custom_call.1} parent=1 // pred_region
      %s17 = ssub.s32 4608, 4608
      %18 = vsyncadd [#allocation3], %s17
      %s19 = sshll.u32 [#allocation2], 4
      %s20 = int_to_ptr.vmem [resolvable:$true] %s19
      %25 = dma.hbm_to_vmem [thread:$0]  %s0, 4608, %s20, [#allocation3], 1152, 1152, 72
    $region5: #{tpu_custom_call.1} parent=1 // pred_fallthru
      _
    // Predicated region
    $region6: #{tpu_custom_call.1} parent=1 // pred_check
      _
    $region7: #{tpu_custom_call.1} parent=1 // pred_check_branch
      %27 = sbr.rel (0) target = $region9
    $region8: #{tpu_custom_call.1} parent=1 // pred_region
      %s29 = ssub.s32 4608, 4608
      %30 = vsyncadd [#allocation6], %s29
      %s31 = sshll.u32 [#allocation5], 4
      %s32 = int_to_ptr.vmem [resolvable:$true] %s31
      %37 = dma.hbm_to_vmem [thread:$0]  %s1, 4608, %s32, [#allocation6], 1152, 1152, 72
    $region9: #{tpu_custom_call.1} parent=1 // pred_fallthru
      _
    // Predicated region
    $region10: #{tpu_custom_call.1} parent=1 // pred_check
      _
    $region11: #{tpu_custom_call.1} parent=1 // pred_check_branch
      %39 = sbr.rel (0) target = $region13
    $region12: #{tpu_custom_call.1} parent=1 // pred_region
      %s41 = ssub.s32 1152, 1152
      %42 = vsyncadd [#allocation6], %s41
      %s44 = sshll.u32 [#allocation7], 4
      %s45 = int_to_ptr.vmem [resolvable:$true] %s44
      %47 = dma.hbm_to_vmem [thread:$0]  %s2, 1152, %s45, [#allocation6]
    $region13: #{tpu_custom_call.1} parent=1 // pred_fallthru
      _
    // Predicated region
    $region14: #{tpu_custom_call.1} parent=1 // pred_check
      _
    $region15: #{tpu_custom_call.1} parent=1 // pred_check_branch
      %49 = sbr.rel (0) target = $region17
    $region16: #{tpu_custom_call.1} parent=1 // pred_region
      _
    $region17: #{tpu_custom_call.1} parent=1 // pred_fallthru
      _
    // Predicated region
    $region18: #{tpu_custom_call.1} parent=1 // pred_check
      _
    $region19: #{tpu_custom_call.1} parent=1 // pred_check_branch
      %51 = sbr.rel (0) target = $region21
    $region20: #{tpu_custom_call.1} parent=1 // pred_region
      %s53 = ssub.s32 144, 144
      %54 = vsyncadd [#allocation9], %s53
      %s56 = sshll.u32 [#allocation8], 4
      %s57 = int_to_ptr.vmem [resolvable:$true] %s56
      %59 = dma.hbm_to_vmem [thread:$0]  %s4, 144, %s57, [#allocation9]
    $region21: #{tpu_custom_call.1} parent=1 // pred_fallthru
      _
    // Predicated region
    $region22: #{tpu_custom_call.1} parent=1 // pred_check
      _
    $region23: #{tpu_custom_call.1} parent=1 // pred_check_branch
      %61 = sbr.rel (0) target = $region25
    $region24: #{tpu_custom_call.1} parent=1 // pred_region
      %62 = dma.done [#allocation3], 4608
    $region25: #{tpu_custom_call.1} parent=1 // pred_fallthru
      _
    // Predicated region
    $region26: #{tpu_custom_call.1} parent=1 // pred_check
      _
    $region27: #{tpu_custom_call.1} parent=1 // pred_check_branch
      %64 = sbr.rel (0) target = $region29
    $region28: #{tpu_custom_call.1} parent=1 // pred_region
      %65 = dma.done [#allocation6], 4608
    $region29: #{tpu_custom_call.1} parent=1 // pred_fallthru
      _
    // Predicated region
    $region30: #{tpu_custom_call.1} parent=1 // pred_check
      _
    $region31: #{tpu_custom_call.1} parent=1 // pred_check_branch
      %67 = sbr.rel (0) target = $region33
    $region32: #{tpu_custom_call.1} parent=1 // pred_region
      %68 = dma.done [#allocation6], 1152
    $region33: #{tpu_custom_call.1} parent=1 // pred_fallthru
      _
    // Predicated region
    $region34: #{tpu_custom_call.1} parent=1 // pred_check
      _
    $region35: #{tpu_custom_call.1} parent=1 // pred_check_branch
      %70 = sbr.rel (0) target = $region37
    $region36: #{tpu_custom_call.1} parent=1 // pred_region
      %71 = dma.done [#allocation9], 144
    $region37: #{tpu_custom_call.1} parent=1 // pred_fallthru
      _
    %p72 = scmp.eq.s32.totalorder 0, 0
    // Predicated region
    $region38: #{tpu_custom_call.1} parent=1 // pred_check
      %p73 = pneg %p72
    $region39: #{tpu_custom_call.1} parent=1 // pred_check_branch
      %75 = sbr.rel (%p73) target = $region41
    $region40: #{tpu_custom_call.1} parent=1 // pred_region
      %76 = vst [vmem:[#allocation10] sm:$0xff] 0.0
      %v77 = vlaneseq
      %vm78 = vcmp.ge.s32.totalorder %v77, 0
      %vm79 = vcmp.lt.s32.totalorder %v77, 128
      %vm80 = vmand %vm78, %vm79
      %81 = vst.msk [vmem:[#allocation10 + $0x8] sm:$0x1] %vm80, 0.0
    $region41: #{tpu_custom_call.1} parent=1 // pred_fallthru
      _
    %v82 = vld [vmem:[#allocation2] sm:$0xff]
    %v83 = vld [vmem:[#allocation2 + $0x8] sm:$0xff]
    %v84 = vld [vmem:[#allocation2 + $0x10] sm:$0xff]
    %v85 = vld [vmem:[#allocation2 + $0x18] sm:$0xff]
    %v86 = vld [vmem:[#allocation2 + $0x20] sm:$0xff]
    %v87 = vld [vmem:[#allocation2 + $0x28] sm:$0xff]
    %v88 = vld [vmem:[#allocation2 + $0x30] sm:$0xff]
    %v89 = vld [vmem:[#allocation2 + $0x38] sm:$0xff]
    %v90 = vld [vmem:[#allocation2 + $0x40] sm:$0xff]
    %v91 = vld [vmem:[#allocation2 + $0x48] sm:$0xff]
    %v92 = vld [vmem:[#allocation2 + $0x50] sm:$0xff]
    %v93 = vld [vmem:[#allocation2 + $0x58] sm:$0xff]
    %v94 = vld [vmem:[#allocation2 + $0x60] sm:$0xff]
    %v95 = vld [vmem:[#allocation2 + $0x68] sm:$0xff]
    %v96 = vld [vmem:[#allocation2 + $0x70] sm:$0xff]
    %v97 = vld [vmem:[#allocation2 + $0x78] sm:$0xff]
    %v98 = vld [vmem:[#allocation2 + $0x80] sm:$0xff]
    %v99 = vld [vmem:[#allocation2 + $0x88] sm:$0xff]
    %v100 = vld [vmem:[#allocation2 + $0x90] sm:$0xff]
    %v101 = vld [vmem:[#allocation2 + $0x98] sm:$0xff]
    %v102 = vld [vmem:[#allocation2 + $0xa0] sm:$0xff]
    %v103 = vld [vmem:[#allocation2 + $0xa8] sm:$0xff]
    %v104 = vld [vmem:[#allocation2 + $0xb0] sm:$0xff]
    %v105 = vld [vmem:[#allocation2 + $0xb8] sm:$0xff]
    %v106 = vld [vmem:[#allocation2 + $0xc0] sm:$0xff]
    %v107 = vld [vmem:[#allocation2 + $0xc8] sm:$0xff]
    %v108 = vld [vmem:[#allocation2 + $0xd0] sm:$0xff]
    %v109 = vld [vmem:[#allocation2 + $0xd8] sm:$0xff]
    %v110 = vld [vmem:[#allocation2 + $0xe0] sm:$0xff]
    %v111 = vld [vmem:[#allocation2 + $0xe8] sm:$0xff]
    %v112 = vld [vmem:[#allocation2 + $0xf0] sm:$0xff]
    %v113 = vld [vmem:[#allocation2 + $0xf8] sm:$0xff]
    %v114 = vld [vmem:[#allocation2 + $0x100] sm:$0xff]
    %v115 = vld [vmem:[#allocation2 + $0x108] sm:$0xff]
    %v116 = vld [vmem:[#allocation2 + $0x110] sm:$0xff]
    %v117 = vld [vmem:[#allocation2 + $0x118] sm:$0xff]
    %v118 = vld [vmem:[#allocation5] sm:$0xff]
    %v119 = vld [vmem:[#allocation5 + $0x8] sm:$0xff]
    %v120 = vld [vmem:[#allocation5 + $0x10] sm:$0xff]
    %v121 = vld [vmem:[#allocation5 + $0x18] sm:$0xff]
    %v122 = vld [vmem:[#allocation5 + $0x20] sm:$0xff]
    %v123 = vld [vmem:[#allocation5 + $0x28] sm:$0xff]
    %v124 = vld [vmem:[#allocation5 + $0x30] sm:$0xff]
    %v125 = vld [vmem:[#allocation5 + $0x38] sm:$0xff]
    %v126 = vld [vmem:[#allocation5 + $0x40] sm:$0xff]
    %v127 = vld [vmem:[#allocation5 + $0x48] sm:$0xff]
    %v128 = vld [vmem:[#allocation5 + $0x50] sm:$0xff]
    %v129 = vld [vmem:[#allocation5 + $0x58] sm:$0xff]
    %v130 = vld [vmem:[#allocation5 + $0x60] sm:$0xff]
    %v131 = vld [vmem:[#allocation5 + $0x68] sm:$0xff]
    %v132 = vld [vmem:[#allocation5 + $0x70] sm:$0xff]
    %v133 = vld [vmem:[#allocation5 + $0x78] sm:$0xff]
    %v134 = vld [vmem:[#allocation5 + $0x80] sm:$0xff]
    %v135 = vld [vmem:[#allocation5 + $0x88] sm:$0xff]
    %v136 = vld [vmem:[#allocation5 + $0x90] sm:$0xff]
    %v137 = vld [vmem:[#allocation5 + $0x98] sm:$0xff]
    %v138 = vld [vmem:[#allocation5 + $0xa0] sm:$0xff]
    %v139 = vld [vmem:[#allocation5 + $0xa8] sm:$0xff]
    %v140 = vld [vmem:[#allocation5 + $0xb0] sm:$0xff]
    %v141 = vld [vmem:[#allocation5 + $0xb8] sm:$0xff]
    %v142 = vld [vmem:[#allocation5 + $0xc0] sm:$0xff]
    %v143 = vld [vmem:[#allocation5 + $0xc8] sm:$0xff]
    %v144 = vld [vmem:[#allocation5 + $0xd0] sm:$0xff]
    %v145 = vld [vmem:[#allocation5 + $0xd8] sm:$0xff]
    %v146 = vld [vmem:[#allocation5 + $0xe0] sm:$0xff]
    %v147 = vld [vmem:[#allocation5 + $0xe8] sm:$0xff]
    %v148 = vld [vmem:[#allocation5 + $0xf0] sm:$0xff]
    %v149 = vld [vmem:[#allocation5 + $0xf8] sm:$0xff]
    %v150 = vld [vmem:[#allocation5 + $0x100] sm:$0xff]
    %v151 = vld [vmem:[#allocation5 + $0x108] sm:$0xff]
    %v152 = vld [vmem:[#allocation5 + $0x110] sm:$0xff]
    %v153 = vld [vmem:[#allocation5 + $0x118] sm:$0xff]
    %v154 = vld [vmem:[#allocation7] sm:$0xff]
    %v155 = vld [vmem:[#allocation7 + $0x8] sm:$0xff]
    %v156 = vld [vmem:[#allocation7 + $0x10] sm:$0xff]
    %v157 = vld [vmem:[#allocation7 + $0x18] sm:$0xff]
    %v158 = vld [vmem:[#allocation7 + $0x20] sm:$0xff]
    %v159 = vld [vmem:[#allocation7 + $0x28] sm:$0xff]
    %v160 = vld [vmem:[#allocation7 + $0x30] sm:$0xff]
    %v161 = vld [vmem:[#allocation7 + $0x38] sm:$0xff]
    %v162 = vld [vmem:[#allocation7 + $0x40] sm:$0xff]
    %v163 = vunpack.c.0.s8 %v154
    %v164 = vunpack.c.0.s8 %v155
    %v165 = vunpack.c.0.s8 %v156
    %v166 = vunpack.c.0.s8 %v157
    %v167 = vunpack.c.0.s8 %v158
    %v168 = vunpack.c.0.s8 %v159
    %v169 = vunpack.c.0.s8 %v160
    %v170 = vunpack.c.0.s8 %v161
    %v171 = vunpack.c.0.s8 %v162
    %v172 = vunpack.c.1.s8 %v154
    %v173 = vunpack.c.1.s8 %v155
    %v174 = vunpack.c.1.s8 %v156
    %v175 = vunpack.c.1.s8 %v157
    %v176 = vunpack.c.1.s8 %v158
    %v177 = vunpack.c.1.s8 %v159
    %v178 = vunpack.c.1.s8 %v160
    %v179 = vunpack.c.1.s8 %v161
    %v180 = vunpack.c.1.s8 %v162
    %v181 = vunpack.c.2.s8 %v154
    %v182 = vunpack.c.2.s8 %v155
    %v183 = vunpack.c.2.s8 %v156
    %v184 = vunpack.c.2.s8 %v157
    %v185 = vunpack.c.2.s8 %v158
    %v186 = vunpack.c.2.s8 %v159
    %v187 = vunpack.c.2.s8 %v160
    %v188 = vunpack.c.2.s8 %v161
    %v189 = vunpack.c.2.s8 %v162
    %v190 = vunpack.c.3.s8 %v154
    %v191 = vunpack.c.3.s8 %v155
    %v192 = vunpack.c.3.s8 %v156
    %v193 = vunpack.c.3.s8 %v157
    %v194 = vunpack.c.3.s8 %v158
    %v195 = vunpack.c.3.s8 %v159
    %v196 = vunpack.c.3.s8 %v160
    %v197 = vunpack.c.3.s8 %v161
    %v198 = vunpack.c.3.s8 %v162
    %v199 = vcvt.s32.f32 %v163
    %v200 = vcvt.s32.f32 %v164
    %v201 = vcvt.s32.f32 %v165
    %v202 = vcvt.s32.f32 %v166
    %v203 = vcvt.s32.f32 %v167
    %v204 = vcvt.s32.f32 %v168
    %v205 = vcvt.s32.f32 %v169
    %v206 = vcvt.s32.f32 %v170
    %v207 = vcvt.s32.f32 %v171
    %v208 = vcvt.s32.f32 %v172
    %v209 = vcvt.s32.f32 %v173
    %v210 = vcvt.s32.f32 %v174
    %v211 = vcvt.s32.f32 %v175
    %v212 = vcvt.s32.f32 %v176
    %v213 = vcvt.s32.f32 %v177
    %v214 = vcvt.s32.f32 %v178
    %v215 = vcvt.s32.f32 %v179
    %v216 = vcvt.s32.f32 %v180
    %v217 = vcvt.s32.f32 %v181
    %v218 = vcvt.s32.f32 %v182
    %v219 = vcvt.s32.f32 %v183
    %v220 = vcvt.s32.f32 %v184
    %v221 = vcvt.s32.f32 %v185
    %v222 = vcvt.s32.f32 %v186
    %v223 = vcvt.s32.f32 %v187
    %v224 = vcvt.s32.f32 %v188
    %v225 = vcvt.s32.f32 %v189
    %v226 = vcvt.s32.f32 %v190
    %v227 = vcvt.s32.f32 %v191
    %v228 = vcvt.s32.f32 %v192
    %v229 = vcvt.s32.f32 %v193
    %v230 = vcvt.s32.f32 %v194
    %v231 = vcvt.s32.f32 %v195
    %v232 = vcvt.s32.f32 %v196
    %v233 = vcvt.s32.f32 %v197
    %v234 = vcvt.s32.f32 %v198
    %v235 = vld [vmem:[%s3] sm:$0xff]
    %v236 = vld [vmem:[%s3 + $0x8] sm:$0x1]
    %v239 = vlaneseq
    %v240 = vshrl.u32 %v239, 7
    %v241 = vsub.s32 0, %v240
    %v242 = vrot.slane %v235, %v241
    %v243 = vlaneseq
    %v244 = vshrl.u32 %v243, 7
    %v245 = vsub.s32 1, %v244
    %v246 = vrot.slane %v235, %v245
    %v247 = vlaneseq
    %v248 = vshrl.u32 %v247, 7
    %v249 = vsub.s32 2, %v248
    %v250 = vrot.slane %v235, %v249
    %v251 = vlaneseq
    %v252 = vshrl.u32 %v251, 7
    %v253 = vsub.s32 3, %v252
    %v254 = vrot.slane %v235, %v253
    %v255 = vlaneseq
    %v256 = vshrl.u32 %v255, 7
    %v257 = vsub.s32 4, %v256
    %v258 = vrot.slane %v235, %v257
    %v259 = vlaneseq
    %v260 = vshrl.u32 %v259, 7
    %v261 = vsub.s32 5, %v260
    %v262 = vrot.slane %v235, %v261
    %v263 = vlaneseq
    %v264 = vshrl.u32 %v263, 7
    %v265 = vsub.s32 6, %v264
    %v266 = vrot.slane %v235, %v265
    %v267 = vlaneseq
    %v268 = vshrl.u32 %v267, 7
    %v269 = vsub.s32 7, %v268
    %v270 = vrot.slane %v235, %v269
    %v271 = vlaneseq
    %v272 = vshrl.u32 %v271, 7
    %v273 = vsub.s32 0, %v272
    %v274 = vrot.slane %v236, %v273
    %v284 = vmul.f32 %v118, %v242
    %v285 = vmul.f32 %v119, %v246
    %v286 = vmul.f32 %v120, %v250
    %v287 = vmul.f32 %v121, %v254
    %v288 = vmul.f32 %v122, %v258
    %v289 = vmul.f32 %v123, %v262
    %v290 = vmul.f32 %v124, %v266
    %v291 = vmul.f32 %v125, %v270
    %v292 = vmul.f32 %v126, %v274
    %v293 = vmul.f32 %v127, %v242
    %v294 = vmul.f32 %v128, %v246
    %v295 = vmul.f32 %v129, %v250
    %v296 = vmul.f32 %v130, %v254
    %v297 = vmul.f32 %v131, %v258
    %v298 = vmul.f32 %v132, %v262
    %v299 = vmul.f32 %v133, %v266
    %v300 = vmul.f32 %v134, %v270
    %v301 = vmul.f32 %v135, %v274
    %v302 = vmul.f32 %v136, %v242
    %v303 = vmul.f32 %v137, %v246
    %v304 = vmul.f32 %v138, %v250
    %v305 = vmul.f32 %v139, %v254
    %v306 = vmul.f32 %v140, %v258
    %v307 = vmul.f32 %v141, %v262
    %v308 = vmul.f32 %v142, %v266
    %v309 = vmul.f32 %v143, %v270
    %v310 = vmul.f32 %v144, %v274
    %v311 = vmul.f32 %v145, %v242
    %v312 = vmul.f32 %v146, %v246
    %v313 = vmul.f32 %v147, %v250
    %v314 = vmul.f32 %v148, %v254
    %v315 = vmul.f32 %v149, %v258
    %v316 = vmul.f32 %v150, %v262
    %v317 = vmul.f32 %v151, %v266
    %v318 = vmul.f32 %v152, %v270
    %v319 = vmul.f32 %v153, %v274
    %v320 = vld [vmem:[#allocation8] sm:$0xff]
    %v321 = vld [vmem:[#allocation8 + $0x8] sm:$0x1]
    %v324 = vlaneseq
    %v325 = vshrl.u32 %v324, 7
    %v326 = vsub.s32 0, %v325
    %v327 = vrot.slane %v320, %v326
    %v328 = vlaneseq
    %v329 = vshrl.u32 %v328, 7
    %v330 = vsub.s32 1, %v329
    %v331 = vrot.slane %v320, %v330
    %v332 = vlaneseq
    %v333 = vshrl.u32 %v332, 7
    %v334 = vsub.s32 2, %v333
    %v335 = vrot.slane %v320, %v334
    %v336 = vlaneseq
    %v337 = vshrl.u32 %v336, 7
    %v338 = vsub.s32 3, %v337
    %v339 = vrot.slane %v320, %v338
    %v340 = vlaneseq
    %v341 = vshrl.u32 %v340, 7
    %v342 = vsub.s32 4, %v341
    %v343 = vrot.slane %v320, %v342
    %v344 = vlaneseq
    %v345 = vshrl.u32 %v344, 7
    %v346 = vsub.s32 5, %v345
    %v347 = vrot.slane %v320, %v346
    %v348 = vlaneseq
    %v349 = vshrl.u32 %v348, 7
    %v350 = vsub.s32 6, %v349
    %v351 = vrot.slane %v320, %v350
    %v352 = vlaneseq
    %v353 = vshrl.u32 %v352, 7
    %v354 = vsub.s32 7, %v353
    %v355 = vrot.slane %v320, %v354
    %v356 = vlaneseq
    %v357 = vshrl.u32 %v356, 7
    %v358 = vsub.s32 0, %v357
    %v359 = vrot.slane %v321, %v358
    %v369 = vadd.f32 %v284, %v327
    %v370 = vadd.f32 %v285, %v331
    %v371 = vadd.f32 %v286, %v335
    %v372 = vadd.f32 %v287, %v339
    %v373 = vadd.f32 %v288, %v343
    %v374 = vadd.f32 %v289, %v347
    %v375 = vadd.f32 %v290, %v351
    %v376 = vadd.f32 %v291, %v355
    %v377 = vadd.f32 %v292, %v359
    %v378 = vadd.f32 %v293, %v327
    %v379 = vadd.f32 %v294, %v331
    %v380 = vadd.f32 %v295, %v335
    %v381 = vadd.f32 %v296, %v339
    %v382 = vadd.f32 %v297, %v343
    %v383 = vadd.f32 %v298, %v347
    %v384 = vadd.f32 %v299, %v351
    %v385 = vadd.f32 %v300, %v355
    %v386 = vadd.f32 %v301, %v359
    %v387 = vadd.f32 %v302, %v327
    %v388 = vadd.f32 %v303, %v331
    %v389 = vadd.f32 %v304, %v335
    %v390 = vadd.f32 %v305, %v339
    %v391 = vadd.f32 %v306, %v343
    %v392 = vadd.f32 %v307, %v347
    %v393 = vadd.f32 %v308, %v351
    %v394 = vadd.f32 %v309, %v355
    %v395 = vadd.f32 %v310, %v359
    %v396 = vadd.f32 %v311, %v327
    %v397 = vadd.f32 %v312, %v331
    %v398 = vadd.f32 %v313, %v335
    %v399 = vadd.f32 %v314, %v339
    %v400 = vadd.f32 %v315, %v343
    %v401 = vadd.f32 %v316, %v347
    %v402 = vadd.f32 %v317, %v351
    %v403 = vadd.f32 %v318, %v355
    %v404 = vadd.f32 %v319, %v359
    %v405 = vsub.f32 %v82, %v369
    %v406 = vsub.f32 %v83, %v370
    %v407 = vsub.f32 %v84, %v371
    %v408 = vsub.f32 %v85, %v372
    %v409 = vsub.f32 %v86, %v373
    %v410 = vsub.f32 %v87, %v374
    %v411 = vsub.f32 %v88, %v375
    %v412 = vsub.f32 %v89, %v376
    %v413 = vsub.f32 %v90, %v377
    %v414 = vsub.f32 %v91, %v378
    %v415 = vsub.f32 %v92, %v379
    %v416 = vsub.f32 %v93, %v380
    %v417 = vsub.f32 %v94, %v381
    %v418 = vsub.f32 %v95, %v382
    %v419 = vsub.f32 %v96, %v383
    %v420 = vsub.f32 %v97, %v384
    %v421 = vsub.f32 %v98, %v385
    %v422 = vsub.f32 %v99, %v386
    %v423 = vsub.f32 %v100, %v387
    %v424 = vsub.f32 %v101, %v388
    %v425 = vsub.f32 %v102, %v389
    %v426 = vsub.f32 %v103, %v390
    %v427 = vsub.f32 %v104, %v391
    %v428 = vsub.f32 %v105, %v392
    %v429 = vsub.f32 %v106, %v393
    %v430 = vsub.f32 %v107, %v394
    %v431 = vsub.f32 %v108, %v395
    %v432 = vsub.f32 %v109, %v396
    %v433 = vsub.f32 %v110, %v397
    %v434 = vsub.f32 %v111, %v398
    %v435 = vsub.f32 %v112, %v399
    %v436 = vsub.f32 %v113, %v400
    %v437 = vsub.f32 %v114, %v401
    %v438 = vsub.f32 %v115, %v402
    %v439 = vsub.f32 %v116, %v403
    %v440 = vsub.f32 %v117, %v404
    %v441 = vld [vmem:[#allocation10] sm:$0xff]
    %v442 = vld [vmem:[#allocation10 + $0x8] sm:$0x1]
    %v443 = vmul.f32 %v405, %v405
    %v444 = vmul.f32 %v406, %v406
    %v445 = vmul.f32 %v407, %v407
    %v446 = vmul.f32 %v408, %v408
    %v447 = vmul.f32 %v409, %v409
    %v448 = vmul.f32 %v410, %v410
    %v449 = vmul.f32 %v411, %v411
    %v450 = vmul.f32 %v412, %v412
    %v451 = vmul.f32 %v413, %v413
    %v452 = vmul.f32 %v414, %v414
    %v453 = vmul.f32 %v415, %v415
    %v454 = vmul.f32 %v416, %v416
    %v455 = vmul.f32 %v417, %v417
    %v456 = vmul.f32 %v418, %v418
    %v457 = vmul.f32 %v419, %v419
    %v458 = vmul.f32 %v420, %v420
    %v459 = vmul.f32 %v421, %v421
    %v460 = vmul.f32 %v422, %v422
    %v461 = vmul.f32 %v423, %v423
    %v462 = vmul.f32 %v424, %v424
    %v463 = vmul.f32 %v425, %v425
    %v464 = vmul.f32 %v426, %v426
    %v465 = vmul.f32 %v427, %v427
    %v466 = vmul.f32 %v428, %v428
    %v467 = vmul.f32 %v429, %v429
    %v468 = vmul.f32 %v430, %v430
    %v469 = vmul.f32 %v431, %v431
    %v470 = vmul.f32 %v432, %v432
    %v471 = vmul.f32 %v433, %v433
    %v472 = vmul.f32 %v434, %v434
    %v473 = vmul.f32 %v435, %v435
    %v474 = vmul.f32 %v436, %v436
    %v475 = vmul.f32 %v437, %v437
    %v476 = vmul.f32 %v438, %v438
    %v477 = vmul.f32 %v439, %v439
    %v478 = vmul.f32 %v440, %v440
    %v479 = vmul.f32 %v443, %v199
    %v480 = vmul.f32 %v444, %v200
    %v481 = vmul.f32 %v445, %v201
    %v482 = vmul.f32 %v446, %v202
    %v483 = vmul.f32 %v447, %v203
    %v484 = vmul.f32 %v448, %v204
    %v485 = vmul.f32 %v449, %v205
    %v486 = vmul.f32 %v450, %v206
    %v487 = vmul.f32 %v451, %v207
    %v488 = vmul.f32 %v452, %v208
    %v489 = vmul.f32 %v453, %v209
    %v490 = vmul.f32 %v454, %v210
    %v491 = vmul.f32 %v455, %v211
    %v492 = vmul.f32 %v456, %v212
    %v493 = vmul.f32 %v457, %v213
    %v494 = vmul.f32 %v458, %v214
    %v495 = vmul.f32 %v459, %v215
    %v496 = vmul.f32 %v460, %v216
    %v497 = vmul.f32 %v461, %v217
    %v498 = vmul.f32 %v462, %v218
    %v499 = vmul.f32 %v463, %v219
    %v500 = vmul.f32 %v464, %v220
    %v501 = vmul.f32 %v465, %v221
    %v502 = vmul.f32 %v466, %v222
    %v503 = vmul.f32 %v467, %v223
    %v504 = vmul.f32 %v468, %v224
    %v505 = vmul.f32 %v469, %v225
    %v506 = vmul.f32 %v470, %v226
    %v507 = vmul.f32 %v471, %v227
    %v508 = vmul.f32 %v472, %v228
    %v509 = vmul.f32 %v473, %v229
    %v510 = vmul.f32 %v474, %v230
    %v511 = vmul.f32 %v475, %v231
    %v512 = vmul.f32 %v476, %v232
    %v513 = vmul.f32 %v477, %v233
    %v514 = vmul.f32 %v478, %v234
    %v515 = vadd.f32 %v479, %v488
    %v516 = vadd.f32 %v515, %v497
    %v517 = vadd.f32 %v516, %v506
    %v518 = vrot.slane %v517, 4
    %v519 = vadd.f32 %v517, %v518
    %v520 = vrot.slane %v519, 2
    %v521 = vadd.f32 %v519, %v520
    %v522 = vrot.slane %v521, 1
    %v523 = vadd.f32 %v521, %v522
    %v524 = vadd.f32 %v480, %v489
    %v525 = vadd.f32 %v524, %v498
    %v526 = vadd.f32 %v525, %v507
    %v527 = vrot.slane %v526, 4
    %v528 = vadd.f32 %v526, %v527
    %v529 = vrot.slane %v528, 2
    %v530 = vadd.f32 %v528, %v529
    %v531 = vrot.slane %v530, 1
    %v532 = vadd.f32 %v530, %v531
    %v533 = vadd.f32 %v481, %v490
    %v534 = vadd.f32 %v533, %v499
    %v535 = vadd.f32 %v534, %v508
    %v536 = vrot.slane %v535, 4
    %v537 = vadd.f32 %v535, %v536
    %v538 = vrot.slane %v537, 2
    %v539 = vadd.f32 %v537, %v538
    %v540 = vrot.slane %v539, 1
    %v541 = vadd.f32 %v539, %v540
    %v542 = vadd.f32 %v482, %v491
    %v543 = vadd.f32 %v542, %v500
    %v544 = vadd.f32 %v543, %v509
    %v545 = vrot.slane %v544, 4
    %v546 = vadd.f32 %v544, %v545
    %v547 = vrot.slane %v546, 2
    %v548 = vadd.f32 %v546, %v547
    %v549 = vrot.slane %v548, 1
    %v550 = vadd.f32 %v548, %v549
    %v551 = vadd.f32 %v483, %v492
    %v552 = vadd.f32 %v551, %v501
    %v553 = vadd.f32 %v552, %v510
    %v554 = vrot.slane %v553, 4
    %v555 = vadd.f32 %v553, %v554
    %v556 = vrot.slane %v555, 2
    %v557 = vadd.f32 %v555, %v556
    %v558 = vrot.slane %v557, 1
    %v559 = vadd.f32 %v557, %v558
    %v560 = vadd.f32 %v484, %v493
    %v561 = vadd.f32 %v560, %v502
    %v562 = vadd.f32 %v561, %v511
    %v563 = vrot.slane %v562, 4
    %v564 = vadd.f32 %v562, %v563
    %v565 = vrot.slane %v564, 2
    %v566 = vadd.f32 %v564, %v565
    %v567 = vrot.slane %v566, 1
    %v568 = vadd.f32 %v566, %v567
    %v569 = vadd.f32 %v485, %v494
    %v570 = vadd.f32 %v569, %v503
    %v571 = vadd.f32 %v570, %v512
    %v572 = vrot.slane %v571, 4
    %v573 = vadd.f32 %v571, %v572
    %v574 = vrot.slane %v573, 2
    %v575 = vadd.f32 %v573, %v574
    %v576 = vrot.slane %v575, 1
    %v577 = vadd.f32 %v575, %v576
    %v578 = vadd.f32 %v486, %v495
    %v579 = vadd.f32 %v578, %v504
    %v580 = vadd.f32 %v579, %v513
    %v581 = vrot.slane %v580, 4
    %v582 = vadd.f32 %v580, %v581
    %v583 = vrot.slane %v582, 2
    %v584 = vadd.f32 %v582, %v583
    %v585 = vrot.slane %v584, 1
    %v586 = vadd.f32 %v584, %v585
    %v587 = vadd.f32 %v487, %v496
    %v588 = vadd.f32 %v587, %v505
    %v589 = vadd.f32 %v588, %v514
    %v590 = vrot.slane %v589, 4
    %v591 = vadd.f32 %v589, %v590
    %v592 = vrot.slane %v591, 2
    %v593 = vadd.f32 %v591, %v592
    %v594 = vrot.slane %v593, 1
    %v595 = vadd.f32 %v593, %v594
    %v605 = vcombine.low %v523, %v532
    %v606 = vcombine.low %v541, %v550
    %v607 = vcombine.low %v559, %v568
    %v608 = vcombine.low %v577, %v586
    %v610 = vunpack.c.l.s4 1966171168
    %v611 = vunpack.c.0.s8 %v610
    %v612 = vlaneseq
    %v613 = vshrl.u32 %v612, 7
    %v614 = vsub.s32 %v611, %v613
    %v615 = vrot.slane %v605, %v614
    %v617 = vunpack.c.l.s4 1966171168
    %v618 = vunpack.c.0.s8 %v617
    %v619 = vlaneseq
    %v620 = vshrl.u32 %v619, 7
    %v621 = vsub.s32 %v618, %v620
    %v622 = vrot.slane %v606, %v621
    %v624 = vunpack.c.l.s4 1966171168
    %v625 = vunpack.c.0.s8 %v624
    %v626 = vlaneseq
    %v627 = vshrl.u32 %v626, 7
    %v628 = vsub.s32 %v625, %v627
    %v629 = vrot.slane %v607, %v628
    %v631 = vunpack.c.l.s4 1966171168
    %v632 = vunpack.c.0.s8 %v631
    %v633 = vlaneseq
    %v634 = vshrl.u32 %v633, 7
    %v635 = vsub.s32 %v632, %v634
    %v636 = vrot.slane %v608, %v635
    %v637 = vcombine.low %v615, %v622
    %v638 = vcombine.low %v629, %v636
    %v640 = vunpack.c.l.s4 1966171168
    %v641 = vunpack.c.0.s8 %v640
    %v642 = vlaneseq
    %v643 = vshrl.u32 %v642, 7
    %v644 = vsub.s32 %v641, %v643
    %v645 = vrot.slane %v637, %v644
    %v647 = vunpack.c.l.s4 1966171168
    %v648 = vunpack.c.0.s8 %v647
    %v649 = vlaneseq
    %v650 = vshrl.u32 %v649, 7
    %v651 = vsub.s32 %v648, %v650
    %v652 = vrot.slane %v638, %v651
    %v653 = vcombine.low %v645, %v652
    %v655 = vunpack.c.l.s4 1966171168
    %v656 = vunpack.c.0.s8 %v655
    %v657 = vlaneseq
    %v658 = vshrl.u32 %v657, 7
    %v659 = vsub.s32 %v656, %v658
    %v660 = vrot.slane %v595, %v659
    %v662 = vunpack.c.l.s4 1966171168
    %v663 = vunpack.c.0.s8 %v662
    %v664 = vlaneseq
    %v665 = vshrl.u32 %v664, 7
    %v666 = vsub.s32 %v663, %v665
    %v667 = vrot.slane %v660, %v666
    %v670 = vadd.f32 %v441, %v653
    %v671 = vadd.f32 %v442, %v667
    %672 = vst [vmem:[#allocation10] sm:$0xff] %v670
    %v673 = vlaneseq
    %vm674 = vcmp.ge.s32.totalorder %v673, 0
    %vm675 = vcmp.lt.s32.totalorder %v673, 128
    %vm676 = vmand %vm674, %vm675
    %677 = vst.msk [vmem:[#allocation10 + $0x8] sm:$0x1] %vm676, %v671
    // Predicated region
    $region42: #{tpu_custom_call.1} parent=1 // pred_check
      _
    $region43: #{tpu_custom_call.1} parent=1 // pred_check_branch
      %679 = sbr.rel (0) target = $region45
    $region44: #{tpu_custom_call.1} parent=1 // pred_region
      %s681 = ssub.s32 144, 144
      %682 = vsyncadd [#allocation4], %s681
      %s684 = sshll.u32 [#allocation10], 4
      %s685 = int_to_ptr.vmem [resolvable:$true] %s684
      %687 = dma.vmem_to_hbm [thread:$0]  %s685, 144, %s5, [#allocation4]
    $region45: #{tpu_custom_call.1} parent=1 // pred_fallthru
      _
    // Predicated region
    $region46: #{tpu_custom_call.1} parent=1 // pred_check
      _
    $region47: #{tpu_custom_call.1} parent=1 // pred_check_branch
      %689 = sbr.rel (0) target = $region49
    $region48: #{tpu_custom_call.1} parent=1 // pred_region
      %690 = dma.done [#allocation4], 144
    $region49: #{tpu_custom_call.1} parent=1 // pred_fallthru
      _
    %691 = vsyncpa [#allocation3], 1
    %692 = vsyncpa [#allocation6], 1
    %693 = vsyncpa [#allocation9], 1
    %694 = vsyncpa [#allocation4], 1

</llo_original>
